<compile_context>
chip_gen: v6e
topology: v6e:2x2x1
jax: 0.10.0
libtpu: 0.0.40
codegen_flags: <defaults>
</compile_context>

<pallas_src>
import functools
import math

import jax
import jax.numpy as jnp
from jax.experimental import pallas as pl
from jax.experimental.pallas import tpu as pltpu

_CLAMP_MIN = -50000.0
_CLAMP_MAX = 50000.0


def _bert_output_kernel(x_ref, res_ref, w_ref, b_ref, g_ref, beta_ref, o_ref,
                        *, eps):
    # x_ref:    (tm, I)  tile of hidden_states (intermediate activations)
    # res_ref:  (tm, H)  tile of input_tensor (residual)
    # w_ref:    (H, I)   dense weight in PyTorch Linear layout (out x in)
    # b_ref:    (1, H)   dense bias
    # g_ref:    (1, H)   LayerNorm gamma
    # beta_ref: (1, H)   LayerNorm beta

    # Dense: x @ W^T on the MXU.  Operands are fed in their native dtype
    # (bf16 stays bf16), accumulation is f32.  The contraction hits W's
    # "in" axis directly so no transpose is materialized anywhere.
    h = jax.lax.dot_general(
        x_ref[...], w_ref[...],
        dimension_numbers=(((1,), (1,)), ((), ())),
        preferred_element_type=jnp.float32)
    h = h + b_ref[...].astype(jnp.float32)

    # Dropout: identity in eval mode.
    # clamp_values after the dense layer.
    h = jnp.clip(h, _CLAMP_MIN, _CLAMP_MAX)

    # Residual add.
    h = h + res_ref[...].astype(jnp.float32)

    # LayerNorm over the hidden axis (f32 math); gamma folded into the
    # rsqrt scale to save one full tm x H multiply.
    mean = jnp.mean(h, axis=-1, keepdims=True)
    centered = h - mean
    var = jnp.mean(centered * centered, axis=-1, keepdims=True)
    scale = jax.lax.rsqrt(var + eps) * g_ref[...].astype(jnp.float32)
    out = centered * scale + beta_ref[...].astype(jnp.float32)

    # clamp_values after LayerNorm.
    out = jnp.clip(out, _CLAMP_MIN, _CLAMP_MAX)

    o_ref[...] = out.astype(o_ref.dtype)


def bert_output(hidden_states, input_tensor, weight, bias, gamma, beta,
                *, eps=1e-12, row_tile=256):
    """Fused BertOutput forward.

    hidden_states: [B, S, I]   (intermediate activations)
    input_tensor:  [B, S, H]   (residual)
    weight:        [H, I]      (PyTorch nn.Linear layout, out x in)
    bias, gamma, beta: [H]

    row_tile: rows of the token axis per grid step.  256 is MXU-shaped on
    v6e/v7x; use 128 on v5e if desired.
    """
    B, S, I = hidden_states.shape
    H = weight.shape[0]
    assert weight.shape == (H, I)
    assert input_tensor.shape == (B, S, H)

    N = B * S
    tm = min(row_tile, N)                      # full-extent block if N is small
    n_pad = ((N + tm - 1) // tm) * tm          # pad token axis to a tile multiple

    x2 = hidden_states.reshape(N, I)
    r2 = input_tensor.reshape(N, H)
    if n_pad != N:
        x2 = jnp.pad(x2, ((0, n_pad - N), (0, 0)))
        r2 = jnp.pad(r2, ((0, n_pad - N), (0, 0)))

    b2 = bias.reshape(1, H)
    g2 = gamma.reshape(1, H)
    be2 = beta.reshape(1, H)

    kernel = functools.partial(_bert_output_kernel, eps=eps)

    out2 = pl.pallas_call(
        kernel,
        out_shape=jax.ShapeDtypeStruct((n_pad, H), hidden_states.dtype),
        grid_spec=pltpu.PrefetchScalarGridSpec(
            num_scalar_prefetch=0,
            grid=(n_pad // tm,),
            in_specs=[
                pl.BlockSpec((tm, I), lambda i: (i, 0)),       # x tile
                pl.BlockSpec((tm, H), lambda i: (i, 0)),       # residual tile
                # Grid-invariant weight: fetched once, single-buffered.
                pl.BlockSpec((H, I), lambda i: (0, 0),
                             pipeline_mode=pl.Buffered(buffer_count=1)),
                pl.BlockSpec((1, H), lambda i: (0, 0)),        # bias
                pl.BlockSpec((1, H), lambda i: (0, 0)),        # gamma
                pl.BlockSpec((1, H), lambda i: (0, 0)),        # beta
            ],
            out_specs=pl.BlockSpec((tm, H), lambda i: (i, 0)),
        ),
        compiler_params=pltpu.CompilerParams(
            dimension_semantics=("parallel",),
            vmem_limit_bytes=48 * 1024 * 1024,
        ),
    )(x2, r2, weight, b2, g2, be2)

    return out2[:N].reshape(B, S, H)


def _reference(hidden_states, input_tensor, weight, bias, gamma, beta,
               eps=1e-12):
    h = jnp.einsum("bsi,hi->bsh", hidden_states, weight) + bias
    h = jnp.clip(h, _CLAMP_MIN, _CLAMP_MAX)
    h = h + input_tensor
    mean = jnp.mean(h, axis=-1, keepdims=True)
    var = jnp.mean((h - mean) ** 2, axis=-1, keepdims=True)
    out = (h - mean) * jax.lax.rsqrt(var + eps) * gamma + beta
    return jnp.clip(out, _CLAMP_MIN, _CLAMP_MAX)


if __name__ == "__main__":
    # Small shapes consistent with BertOutput: intermediate -> hidden.
    B, S, I, H = 2, 8, 128, 32
    eps = 1e-12

    key = jax.random.PRNGKey(0)
    k1, k2, k3, k4 = jax.random.split(key, 4)

    hidden_states = jax.random.normal(k1, (B, S, I), dtype=jnp.float32)
    input_tensor = jax.random.normal(k2, (B, S, H), dtype=jnp.float32)

    # Deterministic parameter init (nn.Linear-like scale; LN gamma=1, beta=0).
    weight = jax.random.normal(k3, (H, I), dtype=jnp.float32) * (1.0 / math.sqrt(I))
    bias = jax.random.normal(k4, (H,), dtype=jnp.float32) * 0.01
    gamma = jnp.ones((H,), dtype=jnp.float32)
    beta = jnp.zeros((H,), dtype=jnp.float32)

    out = bert_output(hidden_states, input_tensor, weight, bias, gamma, beta,
                      eps=eps)
    out = jax.block_until_ready(out)

    ref = _reference(hidden_states, input_tensor, weight, bias, gamma, beta, eps)
    assert out.shape == (B, S, H)
    assert jnp.allclose(out, ref, atol=1e-4, rtol=1e-4), "mismatch vs reference"

    print("KERNEL_OK")
</pallas_src>

<mosaic_0001>
module attributes {stable_mosaic.version = 11 : i64} {
  func.func @_bert_output_kernel(%arg0: i32, %arg1: memref<16x128xf32, #tpu.memory_space<vmem>>, %arg2: memref<16x32xf32, #tpu.memory_space<vmem>>, %arg3: memref<32x128xf32, #tpu.memory_space<vmem>>, %arg4: memref<1x32xf32, #tpu.memory_space<vmem>>, %arg5: memref<1x32xf32, #tpu.memory_space<vmem>>, %arg6: memref<1x32xf32, #tpu.memory_space<vmem>>, %arg7: memref<16x32xf32, #tpu.memory_space<vmem>>) attributes {dimension_semantics = [#tpu.dimension_semantics<parallel>], iteration_bounds = array<i64: 1>, scalar_prefetch = 0 : i64, scratch_operands = 0 : i64, tpu.core_type = #tpu.core_type<tc>, window_params = [{transform_indices = @transform_0, window_bounds = array<i64: 16, 128>}, {transform_indices = @transform_1, window_bounds = array<i64: 16, 32>}, {pipeline_mode = #tpu.pipeline_mode<synchronous>, transform_indices = @transform_2, window_bounds = array<i64: 32, 128>}, {pipeline_mode = #tpu.pipeline_mode<synchronous>, transform_indices = @transform_3, window_bounds = array<i64: 1, 32>}, {pipeline_mode = #tpu.pipeline_mode<synchronous>, transform_indices = @transform_4, window_bounds = array<i64: 1, 32>}, {pipeline_mode = #tpu.pipeline_mode<synchronous>, transform_indices = @transform_5, window_bounds = array<i64: 1, 32>}, {transform_indices = @transform_6, window_bounds = array<i64: 16, 32>}]} {
    %c0 = arith.constant 0 : index
    %c0_0 = arith.constant 0 : index
    %0 = vector.load %arg1[%c0, %c0_0] : memref<16x128xf32, #tpu.memory_space<vmem>>, vector<16x128xf32>
    %c0_1 = arith.constant 0 : index
    %c0_2 = arith.constant 0 : index
    %1 = vector.load %arg3[%c0_1, %c0_2] : memref<32x128xf32, #tpu.memory_space<vmem>>, vector<32x128xf32>
    %cst = arith.constant dense<0.000000e+00> : vector<16x32xf32>
    %2 = tpu.matmul %0, %1, %cst {dimension_numbers = #tpu.dot_dimension_numbers<[1], [1], [0], [0], [0, 0, 1, 0], [], []>} : vector<16x128xf32>, vector<32x128xf32>, vector<16x32xf32> -> vector<16x32xf32>
    %c0_3 = arith.constant 0 : index
    %c0_4 = arith.constant 0 : index
    %3 = vector.load %arg4[%c0_3, %c0_4] : memref<1x32xf32, #tpu.memory_space<vmem>>, vector<1x32xf32>
    %4 = vector.broadcast %3 : vector<1x32xf32> to vector<16x32xf32>
    %5 = arith.addf %2, %4 : vector<16x32xf32>
    %cst_5 = arith.constant -5.000000e+04 : f32
    %cst_6 = arith.constant 5.000000e+04 : f32
    %6 = vector.broadcast %cst_5 : f32 to vector<16x32xf32>
    %7 = arith.maximumf %6, %5 : vector<16x32xf32>
    %8 = vector.broadcast %cst_6 : f32 to vector<16x32xf32>
    %9 = arith.minimumf %8, %7 : vector<16x32xf32>
    %c0_7 = arith.constant 0 : index
    %c0_8 = arith.constant 0 : index
    %10 = vector.load %arg2[%c0_7, %c0_8] : memref<16x32xf32, #tpu.memory_space<vmem>>, vector<16x32xf32>
    %11 = arith.addf %9, %10 : vector<16x32xf32>
    %cst_9 = arith.constant dense<0.000000e+00> : vector<16xf32>
    %12 = vector.multi_reduction <add>, %11, %cst_9 [1] : vector<16x32xf32> to vector<16xf32>
    %13 = vector.shape_cast %12 : vector<16xf32> to vector<16x1xf32>
    %cst_10 = arith.constant 3.200000e+01 : f32
    %14 = vector.broadcast %cst_10 : f32 to vector<16x1xf32>
    %15 = arith.divf %13, %14 : vector<16x1xf32>
    %16 = vector.broadcast %15 : vector<16x1xf32> to vector<16x32xf32>
    %17 = arith.subf %11, %16 : vector<16x32xf32>
    %18 = arith.mulf %17, %17 : vector<16x32xf32>
    %cst_11 = arith.constant dense<0.000000e+00> : vector<16xf32>
    %19 = vector.multi_reduction <add>, %18, %cst_11 [1] : vector<16x32xf32> to vector<16xf32>
    %20 = vector.shape_cast %19 : vector<16xf32> to vector<16x1xf32>
    %cst_12 = arith.constant 3.200000e+01 : f32
    %21 = vector.broadcast %cst_12 : f32 to vector<16x1xf32>
    %22 = arith.divf %20, %21 : vector<16x1xf32>
    %cst_13 = arith.constant 9.99999996E-13 : f32
    %23 = vector.broadcast %cst_13 : f32 to vector<16x1xf32>
    %24 = arith.addf %22, %23 : vector<16x1xf32>
    %25 = math.rsqrt %24 : vector<16x1xf32>
    %c0_14 = arith.constant 0 : index
    %c0_15 = arith.constant 0 : index
    %26 = vector.load %arg5[%c0_14, %c0_15] : memref<1x32xf32, #tpu.memory_space<vmem>>, vector<1x32xf32>
    %27 = vector.broadcast %25 : vector<16x1xf32> to vector<16x32xf32>
    %28 = vector.broadcast %26 : vector<1x32xf32> to vector<16x32xf32>
    %29 = arith.mulf %27, %28 : vector<16x32xf32>
    %30 = arith.mulf %17, %29 : vector<16x32xf32>
    %c0_16 = arith.constant 0 : index
    %c0_17 = arith.constant 0 : index
    %31 = vector.load %arg6[%c0_16, %c0_17] : memref<1x32xf32, #tpu.memory_space<vmem>>, vector<1x32xf32>
    %32 = vector.broadcast %31 : vector<1x32xf32> to vector<16x32xf32>
    %33 = arith.addf %30, %32 : vector<16x32xf32>
    %cst_18 = arith.constant -5.000000e+04 : f32
    %cst_19 = arith.constant 5.000000e+04 : f32
    %34 = vector.broadcast %cst_18 : f32 to vector<16x32xf32>
    %35 = arith.maximumf %34, %33 : vector<16x32xf32>
    %36 = vector.broadcast %cst_19 : f32 to vector<16x32xf32>
    %37 = arith.minimumf %36, %35 : vector<16x32xf32>
    %c0_20 = arith.constant 0 : index
    %c0_21 = arith.constant 0 : index
    %38 = vector.load %arg7[%c0_20, %c0_21] : memref<16x32xf32, #tpu.memory_space<vmem>>, vector<16x32xf32>
    tpu.vector_store %arg7[%c0_20, %c0_21], %37 {strides = array<i32>} : memref<16x32xf32, #tpu.memory_space<vmem>>, vector<16x32xf32>,
    return
  }
  func.func @transform_0(%arg0: i32) -> (i32, i32) {
    %c0_i32 = arith.constant 0 : i32
    %c0_i32_0 = arith.constant 0 : i32
    return %arg0, %c0_i32 : i32, i32
  }
  func.func @transform_1(%arg0: i32) -> (i32, i32) {
    %c0_i32 = arith.constant 0 : i32
    %c0_i32_0 = arith.constant 0 : i32
    return %arg0, %c0_i32 : i32, i32
  }
  func.func @transform_2(%arg0: i32) -> (i32, i32) {
    %c0_i32 = arith.constant 0 : i32
    %c0_i32_0 = arith.constant 0 : i32
    %c0_i32_1 = arith.constant 0 : i32
    return %c0_i32, %c0_i32_0 : i32, i32
  }
  func.func @transform_3(%arg0: i32) -> (i32, i32) {
    %c0_i32 = arith.constant 0 : i32
    %c0_i32_0 = arith.constant 0 : i32
    %c0_i32_1 = arith.constant 0 : i32
    return %c0_i32, %c0_i32_0 : i32, i32
  }
  func.func @transform_4(%arg0: i32) -> (i32, i32) {
    %c0_i32 = arith.constant 0 : i32
    %c0_i32_0 = arith.constant 0 : i32
    %c0_i32_1 = arith.constant 0 : i32
    return %c0_i32, %c0_i32_0 : i32, i32
  }
  func.func @transform_5(%arg0: i32) -> (i32, i32) {
    %c0_i32 = arith.constant 0 : i32
    %c0_i32_0 = arith.constant 0 : i32
    %c0_i32_1 = arith.constant 0 : i32
    return %c0_i32, %c0_i32_0 : i32, i32
  }
  func.func @transform_6(%arg0: i32) -> (i32, i32) {
    %c0_i32 = arith.constant 0 : i32
    %c0_i32_0 = arith.constant 0 : i32
    return %arg0, %c0_i32 : i32, i32
  }
}

</mosaic_0001>

<llo_original>
// kernel: tpu_custom_call.1
$region0: #{tpu_custom_call.1}
  #allocation0 [shape = 'u32[]', space=smem, size = 0x4, offset = 0x4, fixed_abs, tag = 'smem constant byte address 0x4 - core index']
  #allocation1 [shape = 'u32[144,128]{1,0:T(1,128)}', space=vmem, size = 0x12000, scoped, tag = 'internal scratch']
  %s0 = inlined_call_operand.hbm [shape: f32[16,128], index: 0, kind: input, shape index: {}]
  %s1 = inlined_call_operand.hbm [shape: f32[16,32], index: 1, kind: input, shape index: {}]
  %s2 = inlined_call_operand.hbm [shape: f32[32,128], index: 2, kind: input, shape index: {}]
  %s3 = inlined_call_operand.vmem [shape: f32[1,32], index: 3, kind: input, shape index: {}]
  %s4 = inlined_call_operand.vmem [shape: f32[1,32], index: 4, kind: input, shape index: {}]
  %s5 = inlined_call_operand.vmem [shape: f32[1,32], index: 5, kind: input, shape index: {}]
  %s6 = inlined_call_operand.hbm [shape: f32[16,32], index: 6, kind: output, shape index: {}]
  %s7 = sld [smem:[#allocation0]]
  $region46: #{tpu_custom_call.1} parent=0
    _
  %s9 = ssub.s32 1, %s7
  %s10 = scalar_select 0, %s9, %s7
  $region1: #{tpu_custom_call.1} parent=0
    #allocation2 [shape = 'u8[8192]{0}', space=vmem, size = 0x2000, scoped, tag = 'input window, operand 0, single buffered']
    #allocation3 [shape = 's32[1]{0}', space=sflag, size = 0x4, scoped, tag = 'scoped memory for tpu_custom_call.1']
    #allocation4 [shape = 's32[1]{0}', space=sflag, size = 0x4, scoped, tag = 'scoped memory for tpu_custom_call.1']
    #allocation5 [shape = 'u8[8192]{0}', space=vmem, size = 0x2000, scoped, tag = 'input window, operand 1, single buffered']
    #allocation6 [shape = 's32[1]{0}', space=sflag, size = 0x4, scoped, tag = 'scoped memory for tpu_custom_call.1']
    #allocation7 [shape = 'u8[16384]{0}', space=vmem, size = 0x4000, scoped, tag = 'input window, operand 2, single buffered']
    #allocation8 [shape = 'u8[8192]{0}', space=vmem, size = 0x2000, scoped, tag = 'output window, operand 0, single buffered']
    %11 = vsyncpa [#allocation3], 0
    %12 = vsyncpa [#allocation6], 0
    %13 = vsyncpa [#allocation4], 0
    // Predicated region
    $region2: #{tpu_custom_call.1} parent=1 // pred_check
      _
    $region3: #{tpu_custom_call.1} parent=1 // pred_check_branch
      %15 = sbr.rel (0) target = $region5
    $region4: #{tpu_custom_call.1} parent=1 // pred_region
      %s17 = ssub.s32 256, 256
      %18 = vsyncadd [#allocation3], %s17
      %s19 = sshll.u32 [#allocation2], 4
      %s20 = int_to_ptr.vmem [resolvable:$true] %s19
      %25 = dma.hbm_to_vmem [thread:$0]  %s0, 256, %s20, [#allocation3], 128, 128, 8
    $region5: #{tpu_custom_call.1} parent=1 // pred_fallthru
      _
    // Predicated region
    $region6: #{tpu_custom_call.1} parent=1 // pred_check
      _
    $region7: #{tpu_custom_call.1} parent=1 // pred_check_branch
      %27 = sbr.rel (0) target = $region9
    $region8: #{tpu_custom_call.1} parent=1 // pred_region
      %s29 = ssub.s32 256, 256
      %30 = vsyncadd [#allocation6], %s29
      %s31 = sshll.u32 [#allocation5], 4
      %s32 = int_to_ptr.vmem [resolvable:$true] %s31
      %37 = dma.hbm_to_vmem [thread:$0]  %s1, 256, %s32, [#allocation6], 128, 128, 8
    $region9: #{tpu_custom_call.1} parent=1 // pred_fallthru
      _
    // Predicated region
    $region10: #{tpu_custom_call.1} parent=1 // pred_check
      _
    $region11: #{tpu_custom_call.1} parent=1 // pred_check_branch
      %39 = sbr.rel (0) target = $region13
    $region12: #{tpu_custom_call.1} parent=1 // pred_region
      %s41 = ssub.s32 512, 512
      %42 = vsyncadd [#allocation6], %s41
      %s43 = sshll.u32 [#allocation7], 4
      %s44 = int_to_ptr.vmem [resolvable:$true] %s43
      %49 = dma.hbm_to_vmem [thread:$0]  %s2, 512, %s44, [#allocation6], 128, 128, 8
    $region13: #{tpu_custom_call.1} parent=1 // pred_fallthru
      _
    // Predicated region
    $region14: #{tpu_custom_call.1} parent=1 // pred_check
      _
    $region15: #{tpu_custom_call.1} parent=1 // pred_check_branch
      %51 = sbr.rel (0) target = $region17
    $region16: #{tpu_custom_call.1} parent=1 // pred_region
      _
    $region17: #{tpu_custom_call.1} parent=1 // pred_fallthru
      _
    // Predicated region
    $region18: #{tpu_custom_call.1} parent=1 // pred_check
      _
    $region19: #{tpu_custom_call.1} parent=1 // pred_check_branch
      %53 = sbr.rel (0) target = $region21
    $region20: #{tpu_custom_call.1} parent=1 // pred_region
      _
    $region21: #{tpu_custom_call.1} parent=1 // pred_fallthru
      _
    // Predicated region
    $region22: #{tpu_custom_call.1} parent=1 // pred_check
      _
    $region23: #{tpu_custom_call.1} parent=1 // pred_check_branch
      %55 = sbr.rel (0) target = $region25
    $region24: #{tpu_custom_call.1} parent=1 // pred_region
      _
    $region25: #{tpu_custom_call.1} parent=1 // pred_fallthru
      _
    // Predicated region
    $region26: #{tpu_custom_call.1} parent=1 // pred_check
      _
    $region27: #{tpu_custom_call.1} parent=1 // pred_check_branch
      %57 = sbr.rel (0) target = $region29
    $region28: #{tpu_custom_call.1} parent=1 // pred_region
      %58 = dma.done [#allocation3], 256
    $region29: #{tpu_custom_call.1} parent=1 // pred_fallthru
      _
    // Predicated region
    $region30: #{tpu_custom_call.1} parent=1 // pred_check
      _
    $region31: #{tpu_custom_call.1} parent=1 // pred_check_branch
      %60 = sbr.rel (0) target = $region33
    $region32: #{tpu_custom_call.1} parent=1 // pred_region
      %61 = dma.done [#allocation6], 256
    $region33: #{tpu_custom_call.1} parent=1 // pred_fallthru
      _
    // Predicated region
    $region34: #{tpu_custom_call.1} parent=1 // pred_check
      _
    $region35: #{tpu_custom_call.1} parent=1 // pred_check_branch
      %63 = sbr.rel (0) target = $region37
    $region36: #{tpu_custom_call.1} parent=1 // pred_region
      %64 = dma.done [#allocation6], 512
    $region37: #{tpu_custom_call.1} parent=1 // pred_fallthru
      _
    %v65 = vld [vmem:[#allocation2] sm:$0xff]
    %v66 = vld [vmem:[#allocation2 + $0x8] sm:$0xff]
    %v67 = vld [vmem:[#allocation7] sm:$0xff]
    %v68 = vld [vmem:[#allocation7 + $0x8] sm:$0xff]
    %v69 = vld [vmem:[#allocation7 + $0x10] sm:$0xff]
    %v70 = vld [vmem:[#allocation7 + $0x18] sm:$0xff]
    %v71 = vld [vmem:[%s3] sm:$0x1]
    %v73 = vlaneseq
    %v74 = vshrl.u32 %v73, 7
    %v75 = vsub.s32 0, %v74
    %v76 = vrot.slane %v71, %v75
    %78 = vmatprep.subr.mxu0 0.0
    %79 = vmatpush1.xpose.msra.mxu0 0.0
    %80 = vmatprep.subr.mxu0 0.0
    %81 = vmatpush1.xpose.msra.mxu0 0.0
    %82 = vmatprep.subr.mxu0 0.0
    %83 = vmatpush1.xpose.msra.mxu0 0.0
    %84 = vmatprep.subr.mxu0 0.0
    %85 = vmatpush1.xpose.msra.mxu0 0.0
    %86 = vmatprep.subr.mxu0 0.0
    %87 = vmatpush1.xpose.msra.mxu0 0.0
    %88 = vmatprep.subr.mxu0 0.0
    %89 = vmatpush1.xpose.msra.mxu0 0.0
    %90 = vmatprep.subr.mxu0 0.0
    %91 = vmatpush1.xpose.msra.mxu0 0.0
    %92 = vmatprep.subr.mxu0 0.0
    %93 = vmatpush1.xpose.msra.mxu0 0.0
    %94 = vmatprep.subr.mxu0 0.0
    %95 = vmatpush1.xpose.msra.mxu0 0.0
    %96 = vmatprep.subr.mxu0 0.0
    %97 = vmatpush1.xpose.msra.mxu0 0.0
    %98 = vmatprep.subr.mxu0 0.0
    %99 = vmatpush1.xpose.msra.mxu0 0.0
    %100 = vmatprep.subr.mxu0 0.0
    %101 = vmatpush1.xpose.msra.mxu0 0.0
    %102 = vmatprep.subr.mxu0 0.0
    %103 = vmatpush1.xpose.msra.mxu0 %v70
    %104 = vmatprep.subr.mxu0 0.0
    %105 = vmatpush1.xpose.msra.mxu0 %v69
    %106 = vmatprep.subr.mxu0 0.0
    %107 = vmatpush1.xpose.msra.mxu0 %v68
    %108 = vmatprep.subr.mxu0 0.0
    %109 = vmatpush1.xpose.msra.mxu0 %v67
    %110 = vmatprep.subr.mxu0 0.0
    %111 = vmatpush2.xpose.msra.mxu0 0.0
    %112 = vmatprep.subr.mxu0 0.0
    %113 = vmatpush2.xpose.msra.mxu0 0.0
    %114 = vmatprep.subr.mxu0 0.0
    %115 = vmatpush2.xpose.msra.mxu0 0.0
    %116 = vmatprep.subr.mxu0 0.0
    %117 = vmatpush2.xpose.msra.mxu0 0.0
    %118 = vmatprep.subr.mxu0 0.0
    %119 = vmatpush2.xpose.msra.mxu0 0.0
    %120 = vmatprep.subr.mxu0 0.0
    %121 = vmatpush2.xpose.msra.mxu0 0.0
    %122 = vmatprep.subr.mxu0 0.0
    %123 = vmatpush2.xpose.msra.mxu0 0.0
    %124 = vmatprep.subr.mxu0 0.0
    %125 = vmatpush2.xpose.msra.mxu0 0.0
    %126 = vmatprep.subr.mxu0 0.0
    %127 = vmatpush2.xpose.msra.mxu0 0.0
    %128 = vmatprep.subr.mxu0 0.0
    %129 = vmatpush2.xpose.msra.mxu0 0.0
    %130 = vmatprep.subr.mxu0 0.0
    %131 = vmatpush2.xpose.msra.mxu0 0.0
    %132 = vmatprep.subr.mxu0 0.0
    %133 = vmatpush2.xpose.msra.mxu0 0.0
    %134 = vmatprep.subr.mxu0 0.0
    %135 = vmatpush2.xpose.msra.mxu0 0.0
    %136 = vmatprep.subr.mxu0 0.0
    %137 = vmatpush2.xpose.msra.mxu0 0.0
    %138 = vmatprep.subr.mxu0 0.0
    %139 = vmatpush2.xpose.msra.mxu0 0.0
    %140 = vmatprep.subr.mxu0 0.0
    %141 = vmatpush2.xpose.msra.mxu0 0.0
    %142 = vmatprep.mubr.f32.mxu0 0.0
    %143 = vmatmul.mubr.f32.gmra.mxu0 %v65
    %v144 = vpop.f32.mrf.mxu0
    %v145 = vadd.f32 %v76, %v144
    %v146 = vpop.f32.mrf.mxu0
    %147 = vmatprep.mubr.f32.mxu0 0.0
    %148 = vmatmul.mubr.f32.gmra.mxu0 %v66
    %v149 = vpop.f32.mrf.mxu0
    %v150 = vadd.f32 %v76, %v149
    %v151 = vpop.f32.mrf.mxu0
    %152 = vdwg.mxu0
    %v153 = vmax.f32 %v145, -50000.0
    %v154 = vmax.f32 %v150, -50000.0
    %v155 = vmin.f32 %v153, 50000.0
    %v156 = vmin.f32 %v154, 50000.0
    %v157 = vld [vmem:[#allocation5] sm:$0xff]
    %v158 = vld [vmem:[#allocation5 + $0x8] sm:$0xff]
    %v159 = vadd.f32 %v155, %v157
    %v160 = vadd.f32 %v156, %v158
    %vm161 = vcmask 261120
    %v162 = vsel %vm161, %v159, 0.0
    %163 = vadd.xlane.f32.xlu0 %v162
    %v164 = vpop.xlane.xlu0 %163
    %v165 = vsel %vm161, %v160, 0.0
    %166 = vadd.xlane.f32.xlu0 %v165
    %v167 = vpop.xlane.xlu0 %166
    %v168 = vrcp.pop 32.0
    %v169 = vmul.f32 %v164, %v168
    %v170 = vmul.f32 %v167, %v168
    %v171 = vsub.f32 %v159, %v169
    %v172 = vsub.f32 %v160, %v170
    %v173 = vmul.f32 %v171, %v171
    %v174 = vmul.f32 %v172, %v172
    %v175 = vsel %vm161, %v173, 0.0
    %176 = vadd.xlane.f32.xlu0 %v175
    %v177 = vpop.xlane.xlu0 %176
    %v178 = vsel %vm161, %v174, 0.0
    %179 = vadd.xlane.f32.xlu0 %v178
    %v180 = vpop.xlane.xlu0 %179
    %v181 = vmul.f32 %v177, %v168
    %v182 = vmul.f32 %v180, %v168
    %v183 = vadd.f32 %v181, 1e-12
    %v184 = vadd.f32 %v182, 1e-12
    %v185 = vrsqrt.pop %v183
    %v186 = vrsqrt.pop %v184
    %v187 = vld [vmem:[%s4] sm:$0x1]
    %v189 = vlaneseq
    %v190 = vshrl.u32 %v189, 7
    %v191 = vsub.s32 0, %v190
    %v192 = vrot.slane %v187, %v191
    %v194 = vmul.f32 %v185, %v192
    %v195 = vmul.f32 %v186, %v192
    %v196 = vmul.f32 %v171, %v194
    %v197 = vmul.f32 %v172, %v195
    %v198 = vld [vmem:[%s5] sm:$0x1]
    %v200 = vlaneseq
    %v201 = vshrl.u32 %v200, 7
    %v202 = vsub.s32 0, %v201
    %v203 = vrot.slane %v198, %v202
    %v205 = vadd.f32 %v196, %v203
    %v206 = vadd.f32 %v197, %v203
    %v207 = vmax.f32 %v205, -50000.0
    %v208 = vmax.f32 %v206, -50000.0
    %v209 = vmin.f32 %v207, 50000.0
    %v210 = vmin.f32 %v208, 50000.0
    %211 = vst.msk [vmem:[#allocation8] sm:$0xff] %vm161, %v209
    %212 = vst.msk [vmem:[#allocation8 + $0x8] sm:$0xff] %vm161, %v210
    // Predicated region
    $region38: #{tpu_custom_call.1} parent=1 // pred_check
      _
    $region39: #{tpu_custom_call.1} parent=1 // pred_check_branch
      %214 = sbr.rel (0) target = $region41
    $region40: #{tpu_custom_call.1} parent=1 // pred_region
      %s216 = ssub.s32 256, 256
      %217 = vsyncadd [#allocation4], %s216
      %s218 = sshll.u32 [#allocation8], 4
      %s219 = int_to_ptr.vmem [resolvable:$true] %s218
      %224 = dma.vmem_to_hbm [thread:$0]  %s219, 256, %s6, [#allocation4], 128, 128, 8
    $region41: #{tpu_custom_call.1} parent=1 // pred_fallthru
      _
    // Predicated region
    $region42: #{tpu_custom_call.1} parent=1 // pred_check
      _
    $region43: #{tpu_custom_call.1} parent=1 // pred_check_branch
      %226 = sbr.rel (0) target = $region45
    $region44: #{tpu_custom_call.1} parent=1 // pred_region
      %227 = dma.done [#allocation4], 256
    $region45: #{tpu_custom_call.1} parent=1 // pred_fallthru
      _
    %228 = vsyncpa [#allocation3], 1
    %229 = vsyncpa [#allocation6], 1
    %230 = vsyncpa [#allocation4], 1

</llo_original>
